<compile_context>
chip_gen: v5e
topology: v5e:2x2
jax: 0.10.0
libtpu: 0.0.40
codegen_flags: <defaults>
</compile_context>

<pallas_src>
import jax
import jax.numpy as jnp
from jax.experimental import pallas as pl
from jax.experimental.pallas import tpu as pltpu

STATE_SIZE = 8
ACTION_SIZE = 4
IN_DIM = STATE_SIZE + ACTION_SIZE      # 12
HIDDEN = 150                           # logical hidden units (as in the module)
HIDDEN_PAD = 256                       # padded to a lane / MXU multiple
OUT_DIM = 1


def qnetwork_kernel(x_ref, w1_ref, b1_ref, w2_ref, b2_ref, o_ref):
    # x_ref : (IN_DIM, TB)        bf16   (batch on lanes)
    # w1_ref: (HIDDEN_PAD, IN_DIM) bf16
    # b1_ref: (HIDDEN_PAD, 1)     f32
    # w2_ref: (HIDDEN_PAD, 1)     f32    (zero in padded rows)
    # b2_ref: (1, 1)              f32    (SMEM scalar)
    # o_ref : (1, TB)             f32    (lane-dense output)

    # Layer 1 on the MXU: (HIDDEN_PAD, IN_DIM) @ (IN_DIM, TB) -> (HIDDEN_PAD, TB)
    h = jnp.dot(w1_ref[...], x_ref[...], preferred_element_type=jnp.float32)

    # Bias + sigmoid in f32.  If exp/divide ever shows up as the binding slot,
    # switch to: h = pl.reciprocal(1.0 + jnp.exp(-h), approx=True)
    h = jax.nn.sigmoid(h + b1_ref[...])

    # Layer 2: the N=1 matmul is a VPU multiply + sublane reduction instead of
    # wasting an MXU pass on a single output column.
    q = jnp.sum(h * w2_ref[...], axis=0, keepdims=True)       # (1, TB)
    o_ref[...] = (q + b2_ref[0, 0]).astype(o_ref.dtype)


def qnetwork_forward(x, params, *, tb=None):
    """x: (B, IN_DIM) float32; params from pack_params(). Returns (B, 1) f32."""
    w1_p, b1_p, w2_p, b2_p = params
    B = x.shape[0]

    # Batch tile: lane multiple, capped at 1024 (sized for v7x's 64 MiB VMEM,
    # fine on v5e/v6e as well).
    if tb is None:
        tb = min(1024, pl.cdiv(B, 128) * 128)
    b_pad = pl.cdiv(B, tb) * tb

    # Wrapper-side layout plumbing: batch onto the lane axis, cast to bf16
    # (halves the only B-scaled DMA), zero-pad the ragged batch tail.
    x_t = jnp.transpose(x).astype(jnp.bfloat16)                # (IN_DIM, B)
    if b_pad != B:
        x_t = jnp.pad(x_t, ((0, 0), (0, b_pad - B)))

    out = pl.pallas_call(
        qnetwork_kernel,
        grid=(b_pad // tb,),
        in_specs=[
            pl.BlockSpec((IN_DIM, tb), lambda i: (0, i)),            # x tile
            pl.BlockSpec((HIDDEN_PAD, IN_DIM), lambda i: (0, 0)),    # w1 (resident)
            pl.BlockSpec((HIDDEN_PAD, 1), lambda i: (0, 0)),         # b1 (resident)
            pl.BlockSpec((HIDDEN_PAD, 1), lambda i: (0, 0)),         # w2 (resident)
            pl.BlockSpec(memory_space=pltpu.MemorySpace.SMEM),       # b2 scalar
        ],
        out_specs=pl.BlockSpec((1, tb), lambda i: (0, i)),
        out_shape=jax.ShapeDtypeStruct((1, b_pad), jnp.float32),
        compiler_params=pltpu.CompilerParams(
            dimension_semantics=("parallel",),        # 2 TCs on v7x; no-op on v5e/v6e
            vmem_limit_bytes=32 * 1024 * 1024,
        ),
    )(x_t, w1_p, b1_p, w2_p, b2_p)

    return out[0, :B].reshape(B, OUT_DIM)


def init_params(key):
    """Deterministic uniform(-0.5, 0.5) init, mirroring nn.init.uniform_ on the
    PyTorch-shaped tensors: w1 (150,12), b1 (150,), w2 (1,150), b2 (1,)."""
    k1, k2, k3, k4 = jax.random.split(key, 4)
    w1 = jax.random.uniform(k1, (HIDDEN, IN_DIM), jnp.float32, -0.5, 0.5)
    b1 = jax.random.uniform(k2, (HIDDEN,), jnp.float32, -0.5, 0.5)
    w2 = jax.random.uniform(k3, (OUT_DIM, HIDDEN), jnp.float32, -0.5, 0.5)
    b2 = jax.random.uniform(k4, (OUT_DIM,), jnp.float32, -0.5, 0.5)
    return w1, b1, w2, b2


def pack_params(w1, b1, w2, b2):
    """Pad HIDDEN 150 -> 256 and lay params out for the kernel.
    w2/b1 pad entries are zero so padded hidden units contribute nothing."""
    w1_p = jnp.zeros((HIDDEN_PAD, IN_DIM), jnp.bfloat16)
    w1_p = w1_p.at[:HIDDEN, :].set(w1.astype(jnp.bfloat16))
    b1_p = jnp.zeros((HIDDEN_PAD, 1), jnp.float32).at[:HIDDEN, 0].set(b1)
    w2_p = jnp.zeros((HIDDEN_PAD, 1), jnp.float32).at[:HIDDEN, 0].set(w2[0])
    b2_p = b2.reshape(1, 1).astype(jnp.float32)
    return w1_p, b1_p, w2_p, b2_p


if __name__ == "__main__":
    key = jax.random.PRNGKey(0)
    pkey, xkey = jax.random.split(key)
    w1, b1, w2, b2 = init_params(pkey)
    params = pack_params(w1, b1, w2, b2)

    B = 2
    x = jax.random.normal(xkey, (B, IN_DIM), jnp.float32)

    out = qnetwork_forward(x, params)
    out = jax.block_until_ready(out)

    # Pure-JAX reference of the same math (same bf16 cast on layer 1 so the
    # check isolates kernel correctness, not quantization error).
    xb = x.astype(jnp.bfloat16).astype(jnp.float32)
    w1b = w1.astype(jnp.bfloat16).astype(jnp.float32)
    h_ref = jax.nn.sigmoid(xb @ w1b.T + b1[None, :])
    ref = h_ref @ w2.T + b2[None, :]

    assert out.shape == (B, OUT_DIM)
    assert jnp.allclose(out, ref, atol=1e-3, rtol=1e-3)

    print("KERNEL_OK")
</pallas_src>

<mosaic_0001>
module attributes {stable_mosaic.version = 11 : i64} {
  func.func @qnetwork_kernel(%arg0: i32, %arg1: memref<12x128xbf16, #tpu.memory_space<vmem>>, %arg2: memref<256x12xbf16, #tpu.memory_space<vmem>>, %arg3: memref<256x1xf32, #tpu.memory_space<vmem>>, %arg4: memref<256x1xf32, #tpu.memory_space<vmem>>, %arg5: memref<1x1xf32, #tpu.memory_space<smem>>, %arg6: memref<1x128xf32, #tpu.memory_space<vmem>>) attributes {dimension_semantics = [#tpu.dimension_semantics<parallel>], iteration_bounds = array<i64: 1>, scalar_prefetch = 0 : i64, scratch_operands = 0 : i64, tpu.core_type = #tpu.core_type<tc>, window_params = [{transform_indices = @transform_0, window_bounds = array<i64: 12, 128>}, {pipeline_mode = #tpu.pipeline_mode<synchronous>, transform_indices = @transform_1, window_bounds = array<i64: 256, 12>}, {pipeline_mode = #tpu.pipeline_mode<synchronous>, transform_indices = @transform_2, window_bounds = array<i64: 256, 1>}, {pipeline_mode = #tpu.pipeline_mode<synchronous>, transform_indices = @transform_3, window_bounds = array<i64: 256, 1>}, {transform_indices = @transform_4, window_bounds = array<i64: 1, 1>}, {transform_indices = @transform_5, window_bounds = array<i64: 1, 128>}]} {
    %c0 = arith.constant 0 : index
    %c0_0 = arith.constant 0 : index
    %0 = vector.load %arg2[%c0, %c0_0] : memref<256x12xbf16, #tpu.memory_space<vmem>>, vector<256x12xbf16>
    %c0_1 = arith.constant 0 : index
    %c0_2 = arith.constant 0 : index
    %1 = vector.load %arg1[%c0_1, %c0_2] : memref<12x128xbf16, #tpu.memory_space<vmem>>, vector<12x128xbf16>
    %cst = arith.constant dense<0.000000e+00> : vector<256x128xf32>
    %2 = tpu.matmul %0, %1, %cst {dimension_numbers = #tpu.dot_dimension_numbers<[1], [0], [0], [1], [0, 0, 1, 1], [], []>} : vector<256x12xbf16>, vector<12x128xbf16>, vector<256x128xf32> -> vector<256x128xf32>
    %c0_3 = arith.constant 0 : index
    %c0_4 = arith.constant 0 : index
    %3 = vector.load %arg3[%c0_3, %c0_4] : memref<256x1xf32, #tpu.memory_space<vmem>>, vector<256x1xf32>
    %4 = vector.broadcast %3 : vector<256x1xf32> to vector<256x128xf32>
    %5 = arith.addf %2, %4 : vector<256x128xf32>
    %6 = arith.negf %5 : vector<256x128xf32>
    %7 = math.exp %6 : vector<256x128xf32>
    %cst_5 = arith.constant 1.000000e+00 : f32
    %8 = vector.broadcast %cst_5 : f32 to vector<256x128xf32>
    %9 = arith.addf %8, %7 : vector<256x128xf32>
    %10 = arith.divf %8, %9 : vector<256x128xf32>
    %c0_6 = arith.constant 0 : index
    %c0_7 = arith.constant 0 : index
    %11 = vector.load %arg4[%c0_6, %c0_7] : memref<256x1xf32, #tpu.memory_space<vmem>>, vector<256x1xf32>
    %12 = vector.broadcast %11 : vector<256x1xf32> to vector<256x128xf32>
    %13 = arith.mulf %10, %12 : vector<256x128xf32>
    %cst_8 = arith.constant dense<0.000000e+00> : vector<128xf32>
    %14 = vector.multi_reduction <add>, %13, %cst_8 [0] : vector<256x128xf32> to vector<128xf32>
    %15 = vector.shape_cast %14 : vector<128xf32> to vector<1x128xf32>
    %c0_9 = arith.constant 0 : index
    %c0_10 = arith.constant 0 : index
    %16 = memref.load %arg5[%c0_9, %c0_10] : memref<1x1xf32, #tpu.memory_space<smem>>
    %17 = vector.broadcast %16 : f32 to vector<1x128xf32>
    %18 = arith.addf %15, %17 : vector<1x128xf32>
    %c0_11 = arith.constant 0 : index
    %c0_12 = arith.constant 0 : index
    %19 = vector.load %arg6[%c0_11, %c0_12] : memref<1x128xf32, #tpu.memory_space<vmem>>, vector<1x128xf32>
    tpu.vector_store %arg6[%c0_11, %c0_12], %18 {strides = array<i32>} : memref<1x128xf32, #tpu.memory_space<vmem>>, vector<1x128xf32>,
    return
  }
  func.func @transform_0(%arg0: i32) -> (i32, i32) {
    %c0_i32 = arith.constant 0 : i32
    %c0_i32_0 = arith.constant 0 : i32
    return %c0_i32, %arg0 : i32, i32
  }
  func.func @transform_1(%arg0: i32) -> (i32, i32) {
    %c0_i32 = arith.constant 0 : i32
    %c0_i32_0 = arith.constant 0 : i32
    %c0_i32_1 = arith.constant 0 : i32
    return %c0_i32, %c0_i32_0 : i32, i32
  }
  func.func @transform_2(%arg0: i32) -> (i32, i32) {
    %c0_i32 = arith.constant 0 : i32
    %c0_i32_0 = arith.constant 0 : i32
    %c0_i32_1 = arith.constant 0 : i32
    return %c0_i32, %c0_i32_0 : i32, i32
  }
  func.func @transform_3(%arg0: i32) -> (i32, i32) {
    %c0_i32 = arith.constant 0 : i32
    %c0_i32_0 = arith.constant 0 : i32
    %c0_i32_1 = arith.constant 0 : i32
    return %c0_i32, %c0_i32_0 : i32, i32
  }
  func.func @transform_4(%arg0: i32) -> (i32, i32) {
    %c0_i32 = arith.constant 0 : i32
    %c0_i32_0 = arith.constant 0 : i32
    %c0_i32_1 = arith.constant 0 : i32
    return %c0_i32, %c0_i32_0 : i32, i32
  }
  func.func @transform_5(%arg0: i32) -> (i32, i32) {
    %c0_i32 = arith.constant 0 : i32
    %c0_i32_0 = arith.constant 0 : i32
    return %c0_i32, %arg0 : i32, i32
  }
}

</mosaic_0001>

<llo_original>
// kernel: tpu_custom_call.1
$region0: #{tpu_custom_call.1}
  #allocation0 [shape = 'u32[]', space=smem, size = 0x4, offset = 0x4, fixed_abs, tag = 'smem constant byte address 0x4 - core index']
  #allocation1 [shape = 'u32[72,128]{1,0:T(1,128)}', space=vmem, size = 0x9000, scoped, tag = 'internal scratch']
  #allocation2 [shape = 'f32[1,1]{1,0:T(1,128)S(6)}', space=smem, size = 0x200, scoped, tag = 'scoped memory for tpu_custom_call.1']
  %s0 = inlined_call_operand.vmem [shape: bf16[12,128], index: 0, kind: input, shape index: {}]
  %s1 = inlined_call_operand.vmem [shape: bf16[256,12], index: 1, kind: input, shape index: {}]
  %s2 = inlined_call_operand.vmem [shape: f32[256,1], index: 2, kind: input, shape index: {}]
  %s3 = inlined_call_operand.vmem [shape: f32[256,1], index: 3, kind: input, shape index: {}]
  %s4 = inlined_call_operand.<no memory space> [shape: f32[1,1], index: 4, kind: input, shape index: {}]
  %s5 = inlined_call_operand.hbm [shape: f32[1,128], index: 5, kind: output, shape index: {}]
  %s6 = sld [smem:[#allocation0]]
  $region30: #{tpu_custom_call.1} parent=0
    _
  %s8 = ssub.s32 1, %s6
  %s9 = scalar_select 0, %s8, %s6
  %10 = sst [smem:[#allocation2]] %s4
  $region1: #{tpu_custom_call.1} parent=0
    #allocation3 [shape = 'u8[512]{0}', space=vmem, size = 0x400, scoped, tag = 'output window, operand 0, single buffered']
    #allocation4 [shape = 's32[1]{0}', space=sflag, size = 0x4, scoped, tag = 'scoped memory for tpu_custom_call.1']
    %11 = vsyncpa [#allocation4], 0
    // Predicated region
    $region2: #{tpu_custom_call.1} parent=1 // pred_check
      _
    $region3: #{tpu_custom_call.1} parent=1 // pred_check_branch
      %13 = sbr.rel (0) target = $region5
    $region4: #{tpu_custom_call.1} parent=1 // pred_region
      _
    $region5: #{tpu_custom_call.1} parent=1 // pred_fallthru
      _
    // Predicated region
    $region6: #{tpu_custom_call.1} parent=1 // pred_check
      _
    $region7: #{tpu_custom_call.1} parent=1 // pred_check_branch
      %15 = sbr.rel (0) target = $region9
    $region8: #{tpu_custom_call.1} parent=1 // pred_region
      _
    $region9: #{tpu_custom_call.1} parent=1 // pred_fallthru
      _
    // Predicated region
    $region10: #{tpu_custom_call.1} parent=1 // pred_check
      _
    $region11: #{tpu_custom_call.1} parent=1 // pred_check_branch
      %17 = sbr.rel (0) target = $region13
    $region12: #{tpu_custom_call.1} parent=1 // pred_region
      _
    $region13: #{tpu_custom_call.1} parent=1 // pred_fallthru
      _
    // Predicated region
    $region14: #{tpu_custom_call.1} parent=1 // pred_check
      _
    $region15: #{tpu_custom_call.1} parent=1 // pred_check_branch
      %19 = sbr.rel (0) target = $region17
    $region16: #{tpu_custom_call.1} parent=1 // pred_region
      _
    $region17: #{tpu_custom_call.1} parent=1 // pred_fallthru
      _
    // Predicated region
    $region18: #{tpu_custom_call.1} parent=1 // pred_check
      _
    $region19: #{tpu_custom_call.1} parent=1 // pred_check_branch
      %21 = sbr.rel (0) target = $region21
    $region20: #{tpu_custom_call.1} parent=1 // pred_region
      _
    $region21: #{tpu_custom_call.1} parent=1 // pred_fallthru
      _
    %v23 = vld [vmem:[%s1] sm:$0xf]
    %v24 = vld [vmem:[%s1 + $0x4] sm:$0xf]
    %v25 = vld [vmem:[%s1 + $0x8] sm:$0xf]
    %v26 = vld [vmem:[%s1 + $0xc] sm:$0xf]
    %v27 = vld [vmem:[%s1 + $0x10] sm:$0xf]
    %v28 = vld [vmem:[%s1 + $0x14] sm:$0xf]
    %v29 = vld [vmem:[%s1 + $0x18] sm:$0xf]
    %v30 = vld [vmem:[%s1 + $0x1c] sm:$0xf]
    %v31 = vld [vmem:[%s1 + $0x20] sm:$0xf]
    %v32 = vld [vmem:[%s1 + $0x24] sm:$0xf]
    %v33 = vld [vmem:[%s1 + $0x28] sm:$0xf]
    %v34 = vld [vmem:[%s1 + $0x2c] sm:$0xf]
    %v35 = vld [vmem:[%s1 + $0x30] sm:$0xf]
    %v36 = vld [vmem:[%s1 + $0x34] sm:$0xf]
    %v37 = vld [vmem:[%s1 + $0x38] sm:$0xf]
    %v38 = vld [vmem:[%s1 + $0x3c] sm:$0xf]
    %v39 = vld [vmem:[%s1 + $0x40] sm:$0xf]
    %v40 = vld [vmem:[%s1 + $0x44] sm:$0xf]
    %v41 = vld [vmem:[%s1 + $0x48] sm:$0xf]
    %v42 = vld [vmem:[%s1 + $0x4c] sm:$0xf]
    %v43 = vld [vmem:[%s1 + $0x50] sm:$0xf]
    %v44 = vld [vmem:[%s1 + $0x54] sm:$0xf]
    %v45 = vld [vmem:[%s1 + $0x58] sm:$0xf]
    %v46 = vld [vmem:[%s1 + $0x5c] sm:$0xf]
    %v47 = vld [vmem:[%s1 + $0x60] sm:$0xf]
    %v48 = vld [vmem:[%s1 + $0x64] sm:$0xf]
    %v49 = vld [vmem:[%s1 + $0x68] sm:$0xf]
    %v50 = vld [vmem:[%s1 + $0x6c] sm:$0xf]
    %v51 = vld [vmem:[%s1 + $0x70] sm:$0xf]
    %v52 = vld [vmem:[%s1 + $0x74] sm:$0xf]
    %v53 = vld [vmem:[%s1 + $0x78] sm:$0xf]
    %v54 = vld [vmem:[%s1 + $0x7c] sm:$0xf]
    %v55 = vld [vmem:[%s0] sm:$0xf]
    %v56 = vld [vmem:[%s0 + $0x4] sm:$0x3]
    %v57 = vld [vmem:[%s2] sm:$0xff]
    %v58 = vld [vmem:[%s2 + $0x8] sm:$0xff]
    %v59 = vld [vmem:[%s2 + $0x10] sm:$0xff]
    %v60 = vld [vmem:[%s2 + $0x18] sm:$0xff]
    %v61 = vld [vmem:[%s2 + $0x20] sm:$0xff]
    %v62 = vld [vmem:[%s2 + $0x28] sm:$0xff]
    %v63 = vld [vmem:[%s2 + $0x30] sm:$0xff]
    %v64 = vld [vmem:[%s2 + $0x38] sm:$0xff]
    %v65 = vld [vmem:[%s2 + $0x40] sm:$0xff]
    %v66 = vld [vmem:[%s2 + $0x48] sm:$0xff]
    %v67 = vld [vmem:[%s2 + $0x50] sm:$0xff]
    %v68 = vld [vmem:[%s2 + $0x58] sm:$0xff]
    %v69 = vld [vmem:[%s2 + $0x60] sm:$0xff]
    %v70 = vld [vmem:[%s2 + $0x68] sm:$0xff]
    %v71 = vld [vmem:[%s2 + $0x70] sm:$0xff]
    %v72 = vld [vmem:[%s2 + $0x78] sm:$0xff]
    %v73 = vld [vmem:[%s2 + $0x80] sm:$0xff]
    %v74 = vld [vmem:[%s2 + $0x88] sm:$0xff]
    %v75 = vld [vmem:[%s2 + $0x90] sm:$0xff]
    %v76 = vld [vmem:[%s2 + $0x98] sm:$0xff]
    %v77 = vld [vmem:[%s2 + $0xa0] sm:$0xff]
    %v78 = vld [vmem:[%s2 + $0xa8] sm:$0xff]
    %v79 = vld [vmem:[%s2 + $0xb0] sm:$0xff]
    %v80 = vld [vmem:[%s2 + $0xb8] sm:$0xff]
    %v81 = vld [vmem:[%s2 + $0xc0] sm:$0xff]
    %v82 = vld [vmem:[%s2 + $0xc8] sm:$0xff]
    %v83 = vld [vmem:[%s2 + $0xd0] sm:$0xff]
    %v84 = vld [vmem:[%s2 + $0xd8] sm:$0xff]
    %v85 = vld [vmem:[%s2 + $0xe0] sm:$0xff]
    %v86 = vld [vmem:[%s2 + $0xe8] sm:$0xff]
    %v87 = vld [vmem:[%s2 + $0xf0] sm:$0xff]
    %v88 = vld [vmem:[%s2 + $0xf8] sm:$0xff]
    %90 = vset.pattern.permute.xlu0 0
    %91 = vperm.xlu0 %90, %v57
    %v92 = vpop.permute.xlu0 %91
    %95 = vset.pattern.permute.xlu0 0
    %96 = vperm.xlu0 %95, %v58
    %v97 = vpop.permute.xlu0 %96
    %100 = vset.pattern.permute.xlu0 0
    %101 = vperm.xlu0 %100, %v59
    %v102 = vpop.permute.xlu0 %101
    %105 = vset.pattern.permute.xlu0 0
    %106 = vperm.xlu0 %105, %v60
    %v107 = vpop.permute.xlu0 %106
    %110 = vset.pattern.permute.xlu0 0
    %111 = vperm.xlu0 %110, %v61
    %v112 = vpop.permute.xlu0 %111
    %115 = vset.pattern.permute.xlu0 0
    %116 = vperm.xlu0 %115, %v62
    %v117 = vpop.permute.xlu0 %116
    %120 = vset.pattern.permute.xlu0 0
    %121 = vperm.xlu0 %120, %v63
    %v122 = vpop.permute.xlu0 %121
    %125 = vset.pattern.permute.xlu0 0
    %126 = vperm.xlu0 %125, %v64
    %v127 = vpop.permute.xlu0 %126
    %130 = vset.pattern.permute.xlu0 0
    %131 = vperm.xlu0 %130, %v65
    %v132 = vpop.permute.xlu0 %131
    %135 = vset.pattern.permute.xlu0 0
    %136 = vperm.xlu0 %135, %v66
    %v137 = vpop.permute.xlu0 %136
    %140 = vset.pattern.permute.xlu0 0
    %141 = vperm.xlu0 %140, %v67
    %v142 = vpop.permute.xlu0 %141
    %145 = vset.pattern.permute.xlu0 0
    %146 = vperm.xlu0 %145, %v68
    %v147 = vpop.permute.xlu0 %146
    %150 = vset.pattern.permute.xlu0 0
    %151 = vperm.xlu0 %150, %v69
    %v152 = vpop.permute.xlu0 %151
    %155 = vset.pattern.permute.xlu0 0
    %156 = vperm.xlu0 %155, %v70
    %v157 = vpop.permute.xlu0 %156
    %160 = vset.pattern.permute.xlu0 0
    %161 = vperm.xlu0 %160, %v71
    %v162 = vpop.permute.xlu0 %161
    %165 = vset.pattern.permute.xlu0 0
    %166 = vperm.xlu0 %165, %v72
    %v167 = vpop.permute.xlu0 %166
    %170 = vset.pattern.permute.xlu0 0
    %171 = vperm.xlu0 %170, %v73
    %v172 = vpop.permute.xlu0 %171
    %175 = vset.pattern.permute.xlu0 0
    %176 = vperm.xlu0 %175, %v74
    %v177 = vpop.permute.xlu0 %176
    %180 = vset.pattern.permute.xlu0 0
    %181 = vperm.xlu0 %180, %v75
    %v182 = vpop.permute.xlu0 %181
    %185 = vset.pattern.permute.xlu0 0
    %186 = vperm.xlu0 %185, %v76
    %v187 = vpop.permute.xlu0 %186
    %190 = vset.pattern.permute.xlu0 0
    %191 = vperm.xlu0 %190, %v77
    %v192 = vpop.permute.xlu0 %191
    %195 = vset.pattern.permute.xlu0 0
    %196 = vperm.xlu0 %195, %v78
    %v197 = vpop.permute.xlu0 %196
    %200 = vset.pattern.permute.xlu0 0
    %201 = vperm.xlu0 %200, %v79
    %v202 = vpop.permute.xlu0 %201
    %205 = vset.pattern.permute.xlu0 0
    %206 = vperm.xlu0 %205, %v80
    %v207 = vpop.permute.xlu0 %206
    %210 = vset.pattern.permute.xlu0 0
    %211 = vperm.xlu0 %210, %v81
    %v212 = vpop.permute.xlu0 %211
    %215 = vset.pattern.permute.xlu0 0
    %216 = vperm.xlu0 %215, %v82
    %v217 = vpop.permute.xlu0 %216
    %220 = vset.pattern.permute.xlu0 0
    %221 = vperm.xlu0 %220, %v83
    %v222 = vpop.permute.xlu0 %221
    %225 = vset.pattern.permute.xlu0 0
    %226 = vperm.xlu0 %225, %v84
    %v227 = vpop.permute.xlu0 %226
    %230 = vset.pattern.permute.xlu0 0
    %231 = vperm.xlu0 %230, %v85
    %v232 = vpop.permute.xlu0 %231
    %235 = vset.pattern.permute.xlu0 0
    %236 = vperm.xlu0 %235, %v86
    %v237 = vpop.permute.xlu0 %236
    %240 = vset.pattern.permute.xlu0 0
    %241 = vperm.xlu0 %240, %v87
    %v242 = vpop.permute.xlu0 %241
    %245 = vset.pattern.permute.xlu0 0
    %246 = vperm.xlu0 %245, %v88
    %v247 = vpop.permute.xlu0 %246
    %v281 = vunpack.c.l.b16 %v23
    %v282 = vunpack.c.l.b16 %v24
    %v283 = vunpack.c.l.b16 %v25
    %v284 = vunpack.c.l.b16 %v26
    %v285 = vunpack.c.l.b16 %v27
    %v286 = vunpack.c.l.b16 %v28
    %v287 = vunpack.c.l.b16 %v29
    %v288 = vunpack.c.l.b16 %v30
    %v289 = vunpack.c.l.b16 %v31
    %v290 = vunpack.c.l.b16 %v32
    %v291 = vunpack.c.l.b16 %v33
    %v292 = vunpack.c.l.b16 %v34
    %v293 = vunpack.c.l.b16 %v35
    %v294 = vunpack.c.l.b16 %v36
    %v295 = vunpack.c.l.b16 %v37
    %v296 = vunpack.c.l.b16 %v38
    %v297 = vunpack.c.l.b16 %v39
    %v298 = vunpack.c.l.b16 %v40
    %v299 = vunpack.c.l.b16 %v41
    %v300 = vunpack.c.l.b16 %v42
    %v301 = vunpack.c.l.b16 %v43
    %v302 = vunpack.c.l.b16 %v44
    %v303 = vunpack.c.l.b16 %v45
    %v304 = vunpack.c.l.b16 %v46
    %v305 = vunpack.c.l.b16 %v47
    %v306 = vunpack.c.l.b16 %v48
    %v307 = vunpack.c.l.b16 %v49
    %v308 = vunpack.c.l.b16 %v50
    %v309 = vunpack.c.l.b16 %v51
    %v310 = vunpack.c.l.b16 %v52
    %v311 = vunpack.c.l.b16 %v53
    %v312 = vunpack.c.l.b16 %v54
    %v313 = vpack.c.b16 %v282, %v281
    %v314 = vpack.c.b16 %v284, %v283
    %v315 = vpack.c.b16 %v286, %v285
    %v316 = vpack.c.b16 %v288, %v287
    %v317 = vpack.c.b16 %v290, %v289
    %v318 = vpack.c.b16 %v292, %v291
    %v319 = vpack.c.b16 %v294, %v293
    %v320 = vpack.c.b16 %v296, %v295
    %v321 = vpack.c.b16 %v298, %v297
    %v322 = vpack.c.b16 %v300, %v299
    %v323 = vpack.c.b16 %v302, %v301
    %v324 = vpack.c.b16 %v304, %v303
    %v325 = vpack.c.b16 %v306, %v305
    %v326 = vpack.c.b16 %v308, %v307
    %v327 = vpack.c.b16 %v310, %v309
    %v328 = vpack.c.b16 %v312, %v311
    %v331 = vunpack.c.l.b16 %v55
    %v332 = vunpack.c.l.b16 %v56
    %v333 = vpack.c.b16 %v332, %v331
    %vm334 = vcmask 97280
    %v336 = vsel %vm334, %v313, 0
    %v339 = vsel %vm334, %v314, 0
    %v342 = vsel %vm334, %v315, 0
    %v345 = vsel %vm334, %v316, 0
    %v348 = vsel %vm334, %v317, 0
    %v351 = vsel %vm334, %v318, 0
    %v354 = vsel %vm334, %v319, 0
    %v357 = vsel %vm334, %v320, 0
    %v360 = vsel %vm334, %v321, 0
    %v363 = vsel %vm334, %v322, 0
    %v366 = vsel %vm334, %v323, 0
    %v369 = vsel %vm334, %v324, 0
    %v372 = vsel %vm334, %v325, 0
    %v375 = vsel %vm334, %v326, 0
    %v378 = vsel %vm334, %v327, 0
    %v381 = vsel %vm334, %v328, 0
    %vm383 = vcmask 1045504
    %v385 = vsel %vm383, %v333, 0
    %387 = vmatpush.bf16.msra.mxu0 0
    %388 = vmatpush.bf16.msra.mxu0 0
    %389 = vmatpush.bf16.msra.mxu0 0
    %390 = vmatpush.bf16.msra.mxu0 0
    %391 = vmatpush.bf16.msra.mxu0 0
    %392 = vmatpush.bf16.msra.mxu0 0
    %393 = vmatpush.bf16.msra.mxu0 0
    %394 = vmatpush.bf16.msra.mxu0 %v385
    %395 = vmatmul.bf16.gmra.mxu0 %v336
    %v396 = vpop.f32.mrf.mxu0
    %v397 = vadd.f32 %v92, %v396
    %v398 = vpop.f32.mrf.mxu0
    %v399 = vadd.f32 %v97, %v398
    %400 = vmatmul.bf16.gmra.mxu0 %v339
    %v401 = vpop.f32.mrf.mxu0
    %v402 = vadd.f32 %v102, %v401
    %v403 = vpop.f32.mrf.mxu0
    %v404 = vadd.f32 %v107, %v403
    %405 = vmatmul.bf16.gmra.mxu0 %v342
    %v406 = vpop.f32.mrf.mxu0
    %v407 = vadd.f32 %v112, %v406
    %v408 = vpop.f32.mrf.mxu0
    %v409 = vadd.f32 %v117, %v408
    %410 = vmatmul.bf16.gmra.mxu0 %v345
    %v411 = vpop.f32.mrf.mxu0
    %v412 = vadd.f32 %v122, %v411
    %v413 = vpop.f32.mrf.mxu0
    %v414 = vadd.f32 %v127, %v413
    %415 = vmatmul.bf16.gmra.mxu0 %v348
    %v416 = vpop.f32.mrf.mxu0
    %v417 = vadd.f32 %v132, %v416
    %v418 = vpop.f32.mrf.mxu0
    %v419 = vadd.f32 %v137, %v418
    %420 = vmatmul.bf16.gmra.mxu0 %v351
    %v421 = vpop.f32.mrf.mxu0
    %v422 = vadd.f32 %v142, %v421
    %v423 = vpop.f32.mrf.mxu0
    %v424 = vadd.f32 %v147, %v423
    %425 = vmatmul.bf16.gmra.mxu0 %v354
    %v426 = vpop.f32.mrf.mxu0
    %v427 = vadd.f32 %v152, %v426
    %v428 = vpop.f32.mrf.mxu0
    %v429 = vadd.f32 %v157, %v428
    %430 = vmatmul.bf16.gmra.mxu0 %v357
    %v431 = vpop.f32.mrf.mxu0
    %v432 = vadd.f32 %v162, %v431
    %v433 = vpop.f32.mrf.mxu0
    %v434 = vadd.f32 %v167, %v433
    %435 = vmatmul.bf16.gmra.mxu0 %v360
    %v436 = vpop.f32.mrf.mxu0
    %v437 = vadd.f32 %v172, %v436
    %v438 = vpop.f32.mrf.mxu0
    %v439 = vadd.f32 %v177, %v438
    %440 = vmatmul.bf16.gmra.mxu0 %v363
    %v441 = vpop.f32.mrf.mxu0
    %v442 = vadd.f32 %v182, %v441
    %v443 = vpop.f32.mrf.mxu0
    %v444 = vadd.f32 %v187, %v443
    %445 = vmatmul.bf16.gmra.mxu0 %v366
    %v446 = vpop.f32.mrf.mxu0
    %v447 = vadd.f32 %v192, %v446
    %v448 = vpop.f32.mrf.mxu0
    %v449 = vadd.f32 %v197, %v448
    %450 = vmatmul.bf16.gmra.mxu0 %v369
    %v451 = vpop.f32.mrf.mxu0
    %v452 = vadd.f32 %v202, %v451
    %v453 = vpop.f32.mrf.mxu0
    %v454 = vadd.f32 %v207, %v453
    %455 = vmatmul.bf16.gmra.mxu0 %v372
    %v456 = vpop.f32.mrf.mxu0
    %v457 = vadd.f32 %v212, %v456
    %v458 = vpop.f32.mrf.mxu0
    %v459 = vadd.f32 %v217, %v458
    %460 = vmatmul.bf16.gmra.mxu0 %v375
    %v461 = vpop.f32.mrf.mxu0
    %v462 = vadd.f32 %v222, %v461
    %v463 = vpop.f32.mrf.mxu0
    %v464 = vadd.f32 %v227, %v463
    %465 = vmatmul.bf16.gmra.mxu0 %v378
    %v466 = vpop.f32.mrf.mxu0
    %v467 = vadd.f32 %v232, %v466
    %v468 = vpop.f32.mrf.mxu0
    %v469 = vadd.f32 %v237, %v468
    %470 = vmatmul.bf16.gmra.mxu0 %v381
    %v471 = vpop.f32.mrf.mxu0
    %v472 = vadd.f32 %v242, %v471
    %v473 = vpop.f32.mrf.mxu0
    %v474 = vadd.f32 %v247, %v473
    %475 = vdwg.mxu0
    %v476 = vxor.u32 %v397, 2147483648
    %v477 = vxor.u32 %v399, 2147483648
    %v478 = vxor.u32 %v402, 2147483648
    %v479 = vxor.u32 %v404, 2147483648
    %v480 = vxor.u32 %v407, 2147483648
    %v481 = vxor.u32 %v409, 2147483648
    %v482 = vxor.u32 %v412, 2147483648
    %v483 = vxor.u32 %v414, 2147483648
    %v484 = vxor.u32 %v417, 2147483648
    %v485 = vxor.u32 %v419, 2147483648
    %v486 = vxor.u32 %v422, 2147483648
    %v487 = vxor.u32 %v424, 2147483648
    %v488 = vxor.u32 %v427, 2147483648
    %v489 = vxor.u32 %v429, 2147483648
    %v490 = vxor.u32 %v432, 2147483648
    %v491 = vxor.u32 %v434, 2147483648
    %v492 = vxor.u32 %v437, 2147483648
    %v493 = vxor.u32 %v439, 2147483648
    %v494 = vxor.u32 %v442, 2147483648
    %v495 = vxor.u32 %v444, 2147483648
    %v496 = vxor.u32 %v447, 2147483648
    %v497 = vxor.u32 %v449, 2147483648
    %v498 = vxor.u32 %v452, 2147483648
    %v499 = vxor.u32 %v454, 2147483648
    %v500 = vxor.u32 %v457, 2147483648
    %v501 = vxor.u32 %v459, 2147483648
    %v502 = vxor.u32 %v462, 2147483648
    %v503 = vxor.u32 %v464, 2147483648
    %v504 = vxor.u32 %v467, 2147483648
    %v505 = vxor.u32 %v469, 2147483648
    %v506 = vxor.u32 %v472, 2147483648
    %v507 = vxor.u32 %v474, 2147483648
    %v508 = vmul.f32 %v476, 1.442695
    %v509 = vpow.pop %v508
    %v510 = vmul.f32 %v477, 1.442695
    %v511 = vpow.pop %v510
    %v512 = vmul.f32 %v478, 1.442695
    %v513 = vpow.pop %v512
    %v514 = vmul.f32 %v479, 1.442695
    %v515 = vpow.pop %v514
    %v516 = vmul.f32 %v480, 1.442695
    %v517 = vpow.pop %v516
    %v518 = vmul.f32 %v481, 1.442695
    %v519 = vpow.pop %v518
    %v520 = vmul.f32 %v482, 1.442695
    %v521 = vpow.pop %v520
    %v522 = vmul.f32 %v483, 1.442695
    %v523 = vpow.pop %v522
    %v524 = vmul.f32 %v484, 1.442695
    %v525 = vpow.pop %v524
    %v526 = vmul.f32 %v485, 1.442695
    %v527 = vpow.pop %v526
    %v528 = vmul.f32 %v486, 1.442695
    %v529 = vpow.pop %v528
    %v530 = vmul.f32 %v487, 1.442695
    %v531 = vpow.pop %v530
    %v532 = vmul.f32 %v488, 1.442695
    %v533 = vpow.pop %v532
    %v534 = vmul.f32 %v489, 1.442695
    %v535 = vpow.pop %v534
    %v536 = vmul.f32 %v490, 1.442695
    %v537 = vpow.pop %v536
    %v538 = vmul.f32 %v491, 1.442695
    %v539 = vpow.pop %v538
    %v540 = vmul.f32 %v492, 1.442695
    %v541 = vpow.pop %v540
    %v542 = vmul.f32 %v493, 1.442695
    %v543 = vpow.pop %v542
    %v544 = vmul.f32 %v494, 1.442695
    %v545 = vpow.pop %v544
    %v546 = vmul.f32 %v495, 1.442695
    %v547 = vpow.pop %v546
    %v548 = vmul.f32 %v496, 1.442695
    %v549 = vpow.pop %v548
    %v550 = vmul.f32 %v497, 1.442695
    %v551 = vpow.pop %v550
    %v552 = vmul.f32 %v498, 1.442695
    %v553 = vpow.pop %v552
    %v554 = vmul.f32 %v499, 1.442695
    %v555 = vpow.pop %v554
    %v556 = vmul.f32 %v500, 1.442695
    %v557 = vpow.pop %v556
    %v558 = vmul.f32 %v501, 1.442695
    %v559 = vpow.pop %v558
    %v560 = vmul.f32 %v502, 1.442695
    %v561 = vpow.pop %v560
    %v562 = vmul.f32 %v503, 1.442695
    %v563 = vpow.pop %v562
    %v564 = vmul.f32 %v504, 1.442695
    %v565 = vpow.pop %v564
    %v566 = vmul.f32 %v505, 1.442695
    %v567 = vpow.pop %v566
    %v568 = vmul.f32 %v506, 1.442695
    %v569 = vpow.pop %v568
    %v570 = vmul.f32 %v507, 1.442695
    %v571 = vpow.pop %v570
    %v572 = vadd.f32 %v509, 1.0
    %v573 = vadd.f32 %v511, 1.0
    %v574 = vadd.f32 %v513, 1.0
    %v575 = vadd.f32 %v515, 1.0
    %v576 = vadd.f32 %v517, 1.0
    %v577 = vadd.f32 %v519, 1.0
    %v578 = vadd.f32 %v521, 1.0
    %v579 = vadd.f32 %v523, 1.0
    %v580 = vadd.f32 %v525, 1.0
    %v581 = vadd.f32 %v527, 1.0
    %v582 = vadd.f32 %v529, 1.0
    %v583 = vadd.f32 %v531, 1.0
    %v584 = vadd.f32 %v533, 1.0
    %v585 = vadd.f32 %v535, 1.0
    %v586 = vadd.f32 %v537, 1.0
    %v587 = vadd.f32 %v539, 1.0
    %v588 = vadd.f32 %v541, 1.0
    %v589 = vadd.f32 %v543, 1.0
    %v590 = vadd.f32 %v545, 1.0
    %v591 = vadd.f32 %v547, 1.0
    %v592 = vadd.f32 %v549, 1.0
    %v593 = vadd.f32 %v551, 1.0
    %v594 = vadd.f32 %v553, 1.0
    %v595 = vadd.f32 %v555, 1.0
    %v596 = vadd.f32 %v557, 1.0
    %v597 = vadd.f32 %v559, 1.0
    %v598 = vadd.f32 %v561, 1.0
    %v599 = vadd.f32 %v563, 1.0
    %v600 = vadd.f32 %v565, 1.0
    %v601 = vadd.f32 %v567, 1.0
    %v602 = vadd.f32 %v569, 1.0
    %v603 = vadd.f32 %v571, 1.0
    %v604 = vrcp.pop %v572
    %v605 = vmul.f32 %v572, %v604
    %v606 = vsub.f32 1.0, %v605
    %v607 = vmul.f32 %v604, %v606
    %v608 = vadd.f32 %v604, %v607
    %vm609 = vweird.f32 %v572
    %vm610 = vweird.f32 %v604
    %vm611 = vmor %vm609, %vm610
    %v612 = vsel %vm611, %v604, %v608
    %v613 = vand.u32 2147483647, %v572
    %vm614 = vcmp.eq.f32.partialorder %v613, 8.507059e+37
    %v615 = vand.u32 %v572, 2147483648
    %v616 = vor.u32 1.1754944e-38, %v615
    %v617 = vsel %vm614, %v616, %v612
    %v618 = vmul.f32 1.0, %v617
    %v619 = vrcp.pop %v573
    %v620 = vmul.f32 %v573, %v619
    %v621 = vsub.f32 1.0, %v620
    %v622 = vmul.f32 %v619, %v621
    %v623 = vadd.f32 %v619, %v622
    %vm624 = vweird.f32 %v573
    %vm625 = vweird.f32 %v619
    %vm626 = vmor %vm624, %vm625
    %v627 = vsel %vm626, %v619, %v623
    %v628 = vand.u32 2147483647, %v573
    %vm629 = vcmp.eq.f32.partialorder %v628, 8.507059e+37
    %v630 = vand.u32 %v573, 2147483648
    %v631 = vor.u32 1.1754944e-38, %v630
    %v632 = vsel %vm629, %v631, %v627
    %v633 = vmul.f32 1.0, %v632
    %v634 = vrcp.pop %v574
    %v635 = vmul.f32 %v574, %v634
    %v636 = vsub.f32 1.0, %v635
    %v637 = vmul.f32 %v634, %v636
    %v638 = vadd.f32 %v634, %v637
    %vm639 = vweird.f32 %v574
    %vm640 = vweird.f32 %v634
    %vm641 = vmor %vm639, %vm640
    %v642 = vsel %vm641, %v634, %v638
    %v643 = vand.u32 2147483647, %v574
    %vm644 = vcmp.eq.f32.partialorder %v643, 8.507059e+37
    %v645 = vand.u32 %v574, 2147483648
    %v646 = vor.u32 1.1754944e-38, %v645
    %v647 = vsel %vm644, %v646, %v642
    %v648 = vmul.f32 1.0, %v647
    %v649 = vrcp.pop %v575
    %v650 = vmul.f32 %v575, %v649
    %v651 = vsub.f32 1.0, %v650
    %v652 = vmul.f32 %v649, %v651
    %v653 = vadd.f32 %v649, %v652
    %vm654 = vweird.f32 %v575
    %vm655 = vweird.f32 %v649
    %vm656 = vmor %vm654, %vm655
    %v657 = vsel %vm656, %v649, %v653
    %v658 = vand.u32 2147483647, %v575
    %vm659 = vcmp.eq.f32.partialorder %v658, 8.507059e+37
    %v660 = vand.u32 %v575, 2147483648
    %v661 = vor.u32 1.1754944e-38, %v660
    %v662 = vsel %vm659, %v661, %v657
    %v663 = vmul.f32 1.0, %v662
    %v664 = vrcp.pop %v576
    %v665 = vmul.f32 %v576, %v664
    %v666 = vsub.f32 1.0, %v665
    %v667 = vmul.f32 %v664, %v666
    %v668 = vadd.f32 %v664, %v667
    %vm669 = vweird.f32 %v576
    %vm670 = vweird.f32 %v664
    %vm671 = vmor %vm669, %vm670
    %v672 = vsel %vm671, %v664, %v668
    %v673 = vand.u32 2147483647, %v576
    %vm674 = vcmp.eq.f32.partialorder %v673, 8.507059e+37
    %v675 = vand.u32 %v576, 2147483648
    %v676 = vor.u32 1.1754944e-38, %v675
    %v677 = vsel %vm674, %v676, %v672
    %v678 = vmul.f32 1.0, %v677
    %v679 = vrcp.pop %v577
    %v680 = vmul.f32 %v577, %v679
    %v681 = vsub.f32 1.0, %v680
    %v682 = vmul.f32 %v679, %v681
    %v683 = vadd.f32 %v679, %v682
    %vm684 = vweird.f32 %v577
    %vm685 = vweird.f32 %v679
    %vm686 = vmor %vm684, %vm685
    %v687 = vsel %vm686, %v679, %v683
    %v688 = vand.u32 2147483647, %v577
    %vm689 = vcmp.eq.f32.partialorder %v688, 8.507059e+37
    %v690 = vand.u32 %v577, 2147483648
    %v691 = vor.u32 1.1754944e-38, %v690
    %v692 = vsel %vm689, %v691, %v687
    %v693 = vmul.f32 1.0, %v692
    %v694 = vrcp.pop %v578
    %v695 = vmul.f32 %v578, %v694
    %v696 = vsub.f32 1.0, %v695
    %v697 = vmul.f32 %v694, %v696
    %v698 = vadd.f32 %v694, %v697
    %vm699 = vweird.f32 %v578
    %vm700 = vweird.f32 %v694
    %vm701 = vmor %vm699, %vm700
    %v702 = vsel %vm701, %v694, %v698
    %v703 = vand.u32 2147483647, %v578
    %vm704 = vcmp.eq.f32.partialorder %v703, 8.507059e+37
    %v705 = vand.u32 %v578, 2147483648
    %v706 = vor.u32 1.1754944e-38, %v705
    %v707 = vsel %vm704, %v706, %v702
    %v708 = vmul.f32 1.0, %v707
    %v709 = vrcp.pop %v579
    %v710 = vmul.f32 %v579, %v709
    %v711 = vsub.f32 1.0, %v710
    %v712 = vmul.f32 %v709, %v711
    %v713 = vadd.f32 %v709, %v712
    %vm714 = vweird.f32 %v579
    %vm715 = vweird.f32 %v709
    %vm716 = vmor %vm714, %vm715
    %v717 = vsel %vm716, %v709, %v713
    %v718 = vand.u32 2147483647, %v579
    %vm719 = vcmp.eq.f32.partialorder %v718, 8.507059e+37
    %v720 = vand.u32 %v579, 2147483648
    %v721 = vor.u32 1.1754944e-38, %v720
    %v722 = vsel %vm719, %v721, %v717
    %v723 = vmul.f32 1.0, %v722
    %v724 = vrcp.pop %v580
    %v725 = vmul.f32 %v580, %v724
    %v726 = vsub.f32 1.0, %v725
    %v727 = vmul.f32 %v724, %v726
    %v728 = vadd.f32 %v724, %v727
    %vm729 = vweird.f32 %v580
    %vm730 = vweird.f32 %v724
    %vm731 = vmor %vm729, %vm730
    %v732 = vsel %vm731, %v724, %v728
    %v733 = vand.u32 2147483647, %v580
    %vm734 = vcmp.eq.f32.partialorder %v733, 8.507059e+37
    %v735 = vand.u32 %v580, 2147483648
    %v736 = vor.u32 1.1754944e-38, %v735
    %v737 = vsel %vm734, %v736, %v732
    %v738 = vmul.f32 1.0, %v737
    %v739 = vrcp.pop %v581
    %v740 = vmul.f32 %v581, %v739
    %v741 = vsub.f32 1.0, %v740
    %v742 = vmul.f32 %v739, %v741
    %v743 = vadd.f32 %v739, %v742
    %vm744 = vweird.f32 %v581
    %vm745 = vweird.f32 %v739
    %vm746 = vmor %vm744, %vm745
    %v747 = vsel %vm746, %v739, %v743
    %v748 = vand.u32 2147483647, %v581
    %vm749 = vcmp.eq.f32.partialorder %v748, 8.507059e+37
    %v750 = vand.u32 %v581, 2147483648
    %v751 = vor.u32 1.1754944e-38, %v750
    %v752 = vsel %vm749, %v751, %v747
    %v753 = vmul.f32 1.0, %v752
    %v754 = vrcp.pop %v582
    %v755 = vmul.f32 %v582, %v754
    %v756 = vsub.f32 1.0, %v755
    %v757 = vmul.f32 %v754, %v756
    %v758 = vadd.f32 %v754, %v757
    %vm759 = vweird.f32 %v582
    %vm760 = vweird.f32 %v754
    %vm761 = vmor %vm759, %vm760
    %v762 = vsel %vm761, %v754, %v758
    %v763 = vand.u32 2147483647, %v582
    %vm764 = vcmp.eq.f32.partialorder %v763, 8.507059e+37
    %v765 = vand.u32 %v582, 2147483648
    %v766 = vor.u32 1.1754944e-38, %v765
    %v767 = vsel %vm764, %v766, %v762
    %v768 = vmul.f32 1.0, %v767
    %v769 = vrcp.pop %v583
    %v770 = vmul.f32 %v583, %v769
    %v771 = vsub.f32 1.0, %v770
    %v772 = vmul.f32 %v769, %v771
    %v773 = vadd.f32 %v769, %v772
    %vm774 = vweird.f32 %v583
    %vm775 = vweird.f32 %v769
    %vm776 = vmor %vm774, %vm775
    %v777 = vsel %vm776, %v769, %v773
    %v778 = vand.u32 2147483647, %v583
    %vm779 = vcmp.eq.f32.partialorder %v778, 8.507059e+37
    %v780 = vand.u32 %v583, 2147483648
    %v781 = vor.u32 1.1754944e-38, %v780
    %v782 = vsel %vm779, %v781, %v777
    %v783 = vmul.f32 1.0, %v782
    %v784 = vrcp.pop %v584
    %v785 = vmul.f32 %v584, %v784
    %v786 = vsub.f32 1.0, %v785
    %v787 = vmul.f32 %v784, %v786
    %v788 = vadd.f32 %v784, %v787
    %vm789 = vweird.f32 %v584
    %vm790 = vweird.f32 %v784
    %vm791 = vmor %vm789, %vm790
    %v792 = vsel %vm791, %v784, %v788
    %v793 = vand.u32 2147483647, %v584
    %vm794 = vcmp.eq.f32.partialorder %v793, 8.507059e+37
    %v795 = vand.u32 %v584, 2147483648
    %v796 = vor.u32 1.1754944e-38, %v795
    %v797 = vsel %vm794, %v796, %v792
    %v798 = vmul.f32 1.0, %v797
    %v799 = vrcp.pop %v585
    %v800 = vmul.f32 %v585, %v799
    %v801 = vsub.f32 1.0, %v800
    %v802 = vmul.f32 %v799, %v801
    %v803 = vadd.f32 %v799, %v802
    %vm804 = vweird.f32 %v585
    %vm805 = vweird.f32 %v799
    %vm806 = vmor %vm804, %vm805
    %v807 = vsel %vm806, %v799, %v803
    %v808 = vand.u32 2147483647, %v585
    %vm809 = vcmp.eq.f32.partialorder %v808, 8.507059e+37
    %v810 = vand.u32 %v585, 2147483648
    %v811 = vor.u32 1.1754944e-38, %v810
    %v812 = vsel %vm809, %v811, %v807
    %v813 = vmul.f32 1.0, %v812
    %v814 = vrcp.pop %v586
    %v815 = vmul.f32 %v586, %v814
    %v816 = vsub.f32 1.0, %v815
    %v817 = vmul.f32 %v814, %v816
    %v818 = vadd.f32 %v814, %v817
    %vm819 = vweird.f32 %v586
    %vm820 = vweird.f32 %v814
    %vm821 = vmor %vm819, %vm820
    %v822 = vsel %vm821, %v814, %v818
    %v823 = vand.u32 2147483647, %v586
    %vm824 = vcmp.eq.f32.partialorder %v823, 8.507059e+37
    %v825 = vand.u32 %v586, 2147483648
    %v826 = vor.u32 1.1754944e-38, %v825
    %v827 = vsel %vm824, %v826, %v822
    %v828 = vmul.f32 1.0, %v827
    %v829 = vrcp.pop %v587
    %v830 = vmul.f32 %v587, %v829
    %v831 = vsub.f32 1.0, %v830
    %v832 = vmul.f32 %v829, %v831
    %v833 = vadd.f32 %v829, %v832
    %vm834 = vweird.f32 %v587
    %vm835 = vweird.f32 %v829
    %vm836 = vmor %vm834, %vm835
    %v837 = vsel %vm836, %v829, %v833
    %v838 = vand.u32 2147483647, %v587
    %vm839 = vcmp.eq.f32.partialorder %v838, 8.507059e+37
    %v840 = vand.u32 %v587, 2147483648
    %v841 = vor.u32 1.1754944e-38, %v840
    %v842 = vsel %vm839, %v841, %v837
    %v843 = vmul.f32 1.0, %v842
    %v844 = vrcp.pop %v588
    %v845 = vmul.f32 %v588, %v844
    %v846 = vsub.f32 1.0, %v845
    %v847 = vmul.f32 %v844, %v846
    %v848 = vadd.f32 %v844, %v847
    %vm849 = vweird.f32 %v588
    %vm850 = vweird.f32 %v844
    %vm851 = vmor %vm849, %vm850
    %v852 = vsel %vm851, %v844, %v848
    %v853 = vand.u32 2147483647, %v588
    %vm854 = vcmp.eq.f32.partialorder %v853, 8.507059e+37
    %v855 = vand.u32 %v588, 2147483648
    %v856 = vor.u32 1.1754944e-38, %v855
    %v857 = vsel %vm854, %v856, %v852
    %v858 = vmul.f32 1.0, %v857
    %v859 = vrcp.pop %v589
    %v860 = vmul.f32 %v589, %v859
    %v861 = vsub.f32 1.0, %v860
    %v862 = vmul.f32 %v859, %v861
    %v863 = vadd.f32 %v859, %v862
    %vm864 = vweird.f32 %v589
    %vm865 = vweird.f32 %v859
    %vm866 = vmor %vm864, %vm865
    %v867 = vsel %vm866, %v859, %v863
    %v868 = vand.u32 2147483647, %v589
    %vm869 = vcmp.eq.f32.partialorder %v868, 8.507059e+37
    %v870 = vand.u32 %v589, 2147483648
    %v871 = vor.u32 1.1754944e-38, %v870
    %v872 = vsel %vm869, %v871, %v867
    %v873 = vmul.f32 1.0, %v872
    %v874 = vrcp.pop %v590
    %v875 = vmul.f32 %v590, %v874
    %v876 = vsub.f32 1.0, %v875
    %v877 = vmul.f32 %v874, %v876
    %v878 = vadd.f32 %v874, %v877
    %vm879 = vweird.f32 %v590
    %vm880 = vweird.f32 %v874
    %vm881 = vmor %vm879, %vm880
    %v882 = vsel %vm881, %v874, %v878
    %v883 = vand.u32 2147483647, %v590
    %vm884 = vcmp.eq.f32.partialorder %v883, 8.507059e+37
    %v885 = vand.u32 %v590, 2147483648
    %v886 = vor.u32 1.1754944e-38, %v885
    %v887 = vsel %vm884, %v886, %v882
    %v888 = vmul.f32 1.0, %v887
    %v889 = vrcp.pop %v591
    %v890 = vmul.f32 %v591, %v889
    %v891 = vsub.f32 1.0, %v890
    %v892 = vmul.f32 %v889, %v891
    %v893 = vadd.f32 %v889, %v892
    %vm894 = vweird.f32 %v591
    %vm895 = vweird.f32 %v889
    %vm896 = vmor %vm894, %vm895
    %v897 = vsel %vm896, %v889, %v893
    %v898 = vand.u32 2147483647, %v591
    %vm899 = vcmp.eq.f32.partialorder %v898, 8.507059e+37
    %v900 = vand.u32 %v591, 2147483648
    %v901 = vor.u32 1.1754944e-38, %v900
    %v902 = vsel %vm899, %v901, %v897
    %v903 = vmul.f32 1.0, %v902
    %v904 = vrcp.pop %v592
    %v905 = vmul.f32 %v592, %v904
    %v906 = vsub.f32 1.0, %v905
    %v907 = vmul.f32 %v904, %v906
    %v908 = vadd.f32 %v904, %v907
    %vm909 = vweird.f32 %v592
    %vm910 = vweird.f32 %v904
    %vm911 = vmor %vm909, %vm910
    %v912 = vsel %vm911, %v904, %v908
    %v913 = vand.u32 2147483647, %v592
    %vm914 = vcmp.eq.f32.partialorder %v913, 8.507059e+37
    %v915 = vand.u32 %v592, 2147483648
    %v916 = vor.u32 1.1754944e-38, %v915
    %v917 = vsel %vm914, %v916, %v912
    %v918 = vmul.f32 1.0, %v917
    %v919 = vrcp.pop %v593
    %v920 = vmul.f32 %v593, %v919
    %v921 = vsub.f32 1.0, %v920
    %v922 = vmul.f32 %v919, %v921
    %v923 = vadd.f32 %v919, %v922
    %vm924 = vweird.f32 %v593
    %vm925 = vweird.f32 %v919
    %vm926 = vmor %vm924, %vm925
    %v927 = vsel %vm926, %v919, %v923
    %v928 = vand.u32 2147483647, %v593
    %vm929 = vcmp.eq.f32.partialorder %v928, 8.507059e+37
    %v930 = vand.u32 %v593, 2147483648
    %v931 = vor.u32 1.1754944e-38, %v930
    %v932 = vsel %vm929, %v931, %v927
    %v933 = vmul.f32 1.0, %v932
    %v934 = vrcp.pop %v594
    %v935 = vmul.f32 %v594, %v934
    %v936 = vsub.f32 1.0, %v935
    %v937 = vmul.f32 %v934, %v936
    %v938 = vadd.f32 %v934, %v937
    %vm939 = vweird.f32 %v594
    %vm940 = vweird.f32 %v934
    %vm941 = vmor %vm939, %vm940
    %v942 = vsel %vm941, %v934, %v938
    %v943 = vand.u32 2147483647, %v594
    %vm944 = vcmp.eq.f32.partialorder %v943, 8.507059e+37
    %v945 = vand.u32 %v594, 2147483648
    %v946 = vor.u32 1.1754944e-38, %v945
    %v947 = vsel %vm944, %v946, %v942
    %v948 = vmul.f32 1.0, %v947
    %v949 = vrcp.pop %v595
    %v950 = vmul.f32 %v595, %v949
    %v951 = vsub.f32 1.0, %v950
    %v952 = vmul.f32 %v949, %v951
    %v953 = vadd.f32 %v949, %v952
    %vm954 = vweird.f32 %v595
    %vm955 = vweird.f32 %v949
    %vm956 = vmor %vm954, %vm955
    %v957 = vsel %vm956, %v949, %v953
    %v958 = vand.u32 2147483647, %v595
    %vm959 = vcmp.eq.f32.partialorder %v958, 8.507059e+37
    %v960 = vand.u32 %v595, 2147483648
    %v961 = vor.u32 1.1754944e-38, %v960
    %v962 = vsel %vm959, %v961, %v957
    %v963 = vmul.f32 1.0, %v962
    %v964 = vrcp.pop %v596
    %v965 = vmul.f32 %v596, %v964
    %v966 = vsub.f32 1.0, %v965
    %v967 = vmul.f32 %v964, %v966
    %v968 = vadd.f32 %v964, %v967
    %vm969 = vweird.f32 %v596
    %vm970 = vweird.f32 %v964
    %vm971 = vmor %vm969, %vm970
    %v972 = vsel %vm971, %v964, %v968
    %v973 = vand.u32 2147483647, %v596
    %vm974 = vcmp.eq.f32.partialorder %v973, 8.507059e+37
    %v975 = vand.u32 %v596, 2147483648
    %v976 = vor.u32 1.1754944e-38, %v975
    %v977 = vsel %vm974, %v976, %v972
    %v978 = vmul.f32 1.0, %v977
    %v979 = vrcp.pop %v597
    %v980 = vmul.f32 %v597, %v979
    %v981 = vsub.f32 1.0, %v980
    %v982 = vmul.f32 %v979, %v981
    %v983 = vadd.f32 %v979, %v982
    %vm984 = vweird.f32 %v597
    %vm985 = vweird.f32 %v979
    %vm986 = vmor %vm984, %vm985
    %v987 = vsel %vm986, %v979, %v983
    %v988 = vand.u32 2147483647, %v597
    %vm989 = vcmp.eq.f32.partialorder %v988, 8.507059e+37
    %v990 = vand.u32 %v597, 2147483648
    %v991 = vor.u32 1.1754944e-38, %v990
    %v992 = vsel %vm989, %v991, %v987
    %v993 = vmul.f32 1.0, %v992
    %v994 = vrcp.pop %v598
    %v995 = vmul.f32 %v598, %v994
    %v996 = vsub.f32 1.0, %v995
    %v997 = vmul.f32 %v994, %v996
    %v998 = vadd.f32 %v994, %v997
    %vm999 = vweird.f32 %v598
    %vm1000 = vweird.f32 %v994
    %vm1001 = vmor %vm999, %vm1000
    %v1002 = vsel %vm1001, %v994, %v998
    %v1003 = vand.u32 2147483647, %v598
    %vm1004 = vcmp.eq.f32.partialorder %v1003, 8.507059e+37
    %v1005 = vand.u32 %v598, 2147483648
    %v1006 = vor.u32 1.1754944e-38, %v1005
    %v1007 = vsel %vm1004, %v1006, %v1002
    %v1008 = vmul.f32 1.0, %v1007
    %v1009 = vrcp.pop %v599
    %v1010 = vmul.f32 %v599, %v1009
    %v1011 = vsub.f32 1.0, %v1010
    %v1012 = vmul.f32 %v1009, %v1011
    %v1013 = vadd.f32 %v1009, %v1012
    %vm1014 = vweird.f32 %v599
    %vm1015 = vweird.f32 %v1009
    %vm1016 = vmor %vm1014, %vm1015
    %v1017 = vsel %vm1016, %v1009, %v1013
    %v1018 = vand.u32 2147483647, %v599
    %vm1019 = vcmp.eq.f32.partialorder %v1018, 8.507059e+37
    %v1020 = vand.u32 %v599, 2147483648
    %v1021 = vor.u32 1.1754944e-38, %v1020
    %v1022 = vsel %vm1019, %v1021, %v1017
    %v1023 = vmul.f32 1.0, %v1022
    %v1024 = vrcp.pop %v600
    %v1025 = vmul.f32 %v600, %v1024
    %v1026 = vsub.f32 1.0, %v1025
    %v1027 = vmul.f32 %v1024, %v1026
    %v1028 = vadd.f32 %v1024, %v1027
    %vm1029 = vweird.f32 %v600
    %vm1030 = vweird.f32 %v1024
    %vm1031 = vmor %vm1029, %vm1030
    %v1032 = vsel %vm1031, %v1024, %v1028
    %v1033 = vand.u32 2147483647, %v600
    %vm1034 = vcmp.eq.f32.partialorder %v1033, 8.507059e+37
    %v1035 = vand.u32 %v600, 2147483648
    %v1036 = vor.u32 1.1754944e-38, %v1035
    %v1037 = vsel %vm1034, %v1036, %v1032
    %v1038 = vmul.f32 1.0, %v1037
    %v1039 = vrcp.pop %v601
    %v1040 = vmul.f32 %v601, %v1039
    %v1041 = vsub.f32 1.0, %v1040
    %v1042 = vmul.f32 %v1039, %v1041
    %v1043 = vadd.f32 %v1039, %v1042
    %vm1044 = vweird.f32 %v601
    %vm1045 = vweird.f32 %v1039
    %vm1046 = vmor %vm1044, %vm1045
    %v1047 = vsel %vm1046, %v1039, %v1043
    %v1048 = vand.u32 2147483647, %v601
    %vm1049 = vcmp.eq.f32.partialorder %v1048, 8.507059e+37
    %v1050 = vand.u32 %v601, 2147483648
    %v1051 = vor.u32 1.1754944e-38, %v1050
    %v1052 = vsel %vm1049, %v1051, %v1047
    %v1053 = vmul.f32 1.0, %v1052
    %v1054 = vrcp.pop %v602
    %v1055 = vmul.f32 %v602, %v1054
    %v1056 = vsub.f32 1.0, %v1055
    %v1057 = vmul.f32 %v1054, %v1056
    %v1058 = vadd.f32 %v1054, %v1057
    %vm1059 = vweird.f32 %v602
    %vm1060 = vweird.f32 %v1054
    %vm1061 = vmor %vm1059, %vm1060
    %v1062 = vsel %vm1061, %v1054, %v1058
    %v1063 = vand.u32 2147483647, %v602
    %vm1064 = vcmp.eq.f32.partialorder %v1063, 8.507059e+37
    %v1065 = vand.u32 %v602, 2147483648
    %v1066 = vor.u32 1.1754944e-38, %v1065
    %v1067 = vsel %vm1064, %v1066, %v1062
    %v1068 = vmul.f32 1.0, %v1067
    %v1069 = vrcp.pop %v603
    %v1070 = vmul.f32 %v603, %v1069
    %v1071 = vsub.f32 1.0, %v1070
    %v1072 = vmul.f32 %v1069, %v1071
    %v1073 = vadd.f32 %v1069, %v1072
    %vm1074 = vweird.f32 %v603
    %vm1075 = vweird.f32 %v1069
    %vm1076 = vmor %vm1074, %vm1075
    %v1077 = vsel %vm1076, %v1069, %v1073
    %v1078 = vand.u32 2147483647, %v603
    %vm1079 = vcmp.eq.f32.partialorder %v1078, 8.507059e+37
    %v1080 = vand.u32 %v603, 2147483648
    %v1081 = vor.u32 1.1754944e-38, %v1080
    %v1082 = vsel %vm1079, %v1081, %v1077
    %v1083 = vmul.f32 1.0, %v1082
    %v1084 = vld [vmem:[%s3] sm:$0xff]
    %v1085 = vld [vmem:[%s3 + $0x8] sm:$0xff]
    %v1086 = vld [vmem:[%s3 + $0x10] sm:$0xff]
    %v1087 = vld [vmem:[%s3 + $0x18] sm:$0xff]
    %v1088 = vld [vmem:[%s3 + $0x20] sm:$0xff]
    %v1089 = vld [vmem:[%s3 + $0x28] sm:$0xff]
    %v1090 = vld [vmem:[%s3 + $0x30] sm:$0xff]
    %v1091 = vld [vmem:[%s3 + $0x38] sm:$0xff]
    %v1092 = vld [vmem:[%s3 + $0x40] sm:$0xff]
    %v1093 = vld [vmem:[%s3 + $0x48] sm:$0xff]
    %v1094 = vld [vmem:[%s3 + $0x50] sm:$0xff]
    %v1095 = vld [vmem:[%s3 + $0x58] sm:$0xff]
    %v1096 = vld [vmem:[%s3 + $0x60] sm:$0xff]
    %v1097 = vld [vmem:[%s3 + $0x68] sm:$0xff]
    %v1098 = vld [vmem:[%s3 + $0x70] sm:$0xff]
    %v1099 = vld [vmem:[%s3 + $0x78] sm:$0xff]
    %v1100 = vld [vmem:[%s3 + $0x80] sm:$0xff]
    %v1101 = vld [vmem:[%s3 + $0x88] sm:$0xff]
    %v1102 = vld [vmem:[%s3 + $0x90] sm:$0xff]
    %v1103 = vld [vmem:[%s3 + $0x98] sm:$0xff]
    %v1104 = vld [vmem:[%s3 + $0xa0] sm:$0xff]
    %v1105 = vld [vmem:[%s3 + $0xa8] sm:$0xff]
    %v1106 = vld [vmem:[%s3 + $0xb0] sm:$0xff]
    %v1107 = vld [vmem:[%s3 + $0xb8] sm:$0xff]
    %v1108 = vld [vmem:[%s3 + $0xc0] sm:$0xff]
    %v1109 = vld [vmem:[%s3 + $0xc8] sm:$0xff]
    %v1110 = vld [vmem:[%s3 + $0xd0] sm:$0xff]
    %v1111 = vld [vmem:[%s3 + $0xd8] sm:$0xff]
    %v1112 = vld [vmem:[%s3 + $0xe0] sm:$0xff]
    %v1113 = vld [vmem:[%s3 + $0xe8] sm:$0xff]
    %v1114 = vld [vmem:[%s3 + $0xf0] sm:$0xff]
    %v1115 = vld [vmem:[%s3 + $0xf8] sm:$0xff]
    %1117 = vset.pattern.permute.xlu0 0
    %1118 = vperm.xlu0 %1117, %v1084
    %v1119 = vpop.permute.xlu0 %1118
    %1122 = vset.pattern.permute.xlu0 0
    %1123 = vperm.xlu0 %1122, %v1085
    %v1124 = vpop.permute.xlu0 %1123
    %1127 = vset.pattern.permute.xlu0 0
    %1128 = vperm.xlu0 %1127, %v1086
    %v1129 = vpop.permute.xlu0 %1128
    %1132 = vset.pattern.permute.xlu0 0
    %1133 = vperm.xlu0 %1132, %v1087
    %v1134 = vpop.permute.xlu0 %1133
    %1137 = vset.pattern.permute.xlu0 0
    %1138 = vperm.xlu0 %1137, %v1088
    %v1139 = vpop.permute.xlu0 %1138
    %1142 = vset.pattern.permute.xlu0 0
    %1143 = vperm.xlu0 %1142, %v1089
    %v1144 = vpop.permute.xlu0 %1143
    %1147 = vset.pattern.permute.xlu0 0
    %1148 = vperm.xlu0 %1147, %v1090
    %v1149 = vpop.permute.xlu0 %1148
    %1152 = vset.pattern.permute.xlu0 0
    %1153 = vperm.xlu0 %1152, %v1091
    %v1154 = vpop.permute.xlu0 %1153
    %1157 = vset.pattern.permute.xlu0 0
    %1158 = vperm.xlu0 %1157, %v1092
    %v1159 = vpop.permute.xlu0 %1158
    %1162 = vset.pattern.permute.xlu0 0
    %1163 = vperm.xlu0 %1162, %v1093
    %v1164 = vpop.permute.xlu0 %1163
    %1167 = vset.pattern.permute.xlu0 0
    %1168 = vperm.xlu0 %1167, %v1094
    %v1169 = vpop.permute.xlu0 %1168
    %1172 = vset.pattern.permute.xlu0 0
    %1173 = vperm.xlu0 %1172, %v1095
    %v1174 = vpop.permute.xlu0 %1173
    %1177 = vset.pattern.permute.xlu0 0
    %1178 = vperm.xlu0 %1177, %v1096
    %v1179 = vpop.permute.xlu0 %1178
    %1182 = vset.pattern.permute.xlu0 0
    %1183 = vperm.xlu0 %1182, %v1097
    %v1184 = vpop.permute.xlu0 %1183
    %1187 = vset.pattern.permute.xlu0 0
    %1188 = vperm.xlu0 %1187, %v1098
    %v1189 = vpop.permute.xlu0 %1188
    %1192 = vset.pattern.permute.xlu0 0
    %1193 = vperm.xlu0 %1192, %v1099
    %v1194 = vpop.permute.xlu0 %1193
    %1197 = vset.pattern.permute.xlu0 0
    %1198 = vperm.xlu0 %1197, %v1100
    %v1199 = vpop.permute.xlu0 %1198
    %1202 = vset.pattern.permute.xlu0 0
    %1203 = vperm.xlu0 %1202, %v1101
    %v1204 = vpop.permute.xlu0 %1203
    %1207 = vset.pattern.permute.xlu0 0
    %1208 = vperm.xlu0 %1207, %v1102
    %v1209 = vpop.permute.xlu0 %1208
    %1212 = vset.pattern.permute.xlu0 0
    %1213 = vperm.xlu0 %1212, %v1103
    %v1214 = vpop.permute.xlu0 %1213
    %1217 = vset.pattern.permute.xlu0 0
    %1218 = vperm.xlu0 %1217, %v1104
    %v1219 = vpop.permute.xlu0 %1218
    %1222 = vset.pattern.permute.xlu0 0
    %1223 = vperm.xlu0 %1222, %v1105
    %v1224 = vpop.permute.xlu0 %1223
    %1227 = vset.pattern.permute.xlu0 0
    %1228 = vperm.xlu0 %1227, %v1106
    %v1229 = vpop.permute.xlu0 %1228
    %1232 = vset.pattern.permute.xlu0 0
    %1233 = vperm.xlu0 %1232, %v1107
    %v1234 = vpop.permute.xlu0 %1233
    %1237 = vset.pattern.permute.xlu0 0
    %1238 = vperm.xlu0 %1237, %v1108
    %v1239 = vpop.permute.xlu0 %1238
    %1242 = vset.pattern.permute.xlu0 0
    %1243 = vperm.xlu0 %1242, %v1109
    %v1244 = vpop.permute.xlu0 %1243
    %1247 = vset.pattern.permute.xlu0 0
    %1248 = vperm.xlu0 %1247, %v1110
    %v1249 = vpop.permute.xlu0 %1248
    %1252 = vset.pattern.permute.xlu0 0
    %1253 = vperm.xlu0 %1252, %v1111
    %v1254 = vpop.permute.xlu0 %1253
    %1257 = vset.pattern.permute.xlu0 0
    %1258 = vperm.xlu0 %1257, %v1112
    %v1259 = vpop.permute.xlu0 %1258
    %1262 = vset.pattern.permute.xlu0 0
    %1263 = vperm.xlu0 %1262, %v1113
    %v1264 = vpop.permute.xlu0 %1263
    %1267 = vset.pattern.permute.xlu0 0
    %1268 = vperm.xlu0 %1267, %v1114
    %v1269 = vpop.permute.xlu0 %1268
    %1272 = vset.pattern.permute.xlu0 0
    %1273 = vperm.xlu0 %1272, %v1115
    %v1274 = vpop.permute.xlu0 %1273
    %v1276 = vmul.f32 %v618, %v1119
    %v1277 = vmul.f32 %v633, %v1124
    %v1278 = vmul.f32 %v648, %v1129
    %v1279 = vmul.f32 %v663, %v1134
    %v1280 = vmul.f32 %v678, %v1139
    %v1281 = vmul.f32 %v693, %v1144
    %v1282 = vmul.f32 %v708, %v1149
    %v1283 = vmul.f32 %v723, %v1154
    %v1284 = vmul.f32 %v738, %v1159
    %v1285 = vmul.f32 %v753, %v1164
    %v1286 = vmul.f32 %v768, %v1169
    %v1287 = vmul.f32 %v783, %v1174
    %v1288 = vmul.f32 %v798, %v1179
    %v1289 = vmul.f32 %v813, %v1184
    %v1290 = vmul.f32 %v828, %v1189
    %v1291 = vmul.f32 %v843, %v1194
    %v1292 = vmul.f32 %v858, %v1199
    %v1293 = vmul.f32 %v873, %v1204
    %v1294 = vmul.f32 %v888, %v1209
    %v1295 = vmul.f32 %v903, %v1214
    %v1296 = vmul.f32 %v918, %v1219
    %v1297 = vmul.f32 %v933, %v1224
    %v1298 = vmul.f32 %v948, %v1229
    %v1299 = vmul.f32 %v963, %v1234
    %v1300 = vmul.f32 %v978, %v1239
    %v1301 = vmul.f32 %v993, %v1244
    %v1302 = vmul.f32 %v1008, %v1249
    %v1303 = vmul.f32 %v1023, %v1254
    %v1304 = vmul.f32 %v1038, %v1259
    %v1305 = vmul.f32 %v1053, %v1264
    %v1306 = vmul.f32 %v1068, %v1269
    %v1307 = vmul.f32 %v1083, %v1274
    %v1308 = vadd.f32 %v1276, %v1277
    %v1309 = vadd.f32 %v1308, %v1278
    %v1310 = vadd.f32 %v1309, %v1279
    %v1311 = vadd.f32 %v1310, %v1280
    %v1312 = vadd.f32 %v1311, %v1281
    %v1313 = vadd.f32 %v1312, %v1282
    %v1314 = vadd.f32 %v1313, %v1283
    %v1315 = vadd.f32 %v1314, %v1284
    %v1316 = vadd.f32 %v1315, %v1285
    %v1317 = vadd.f32 %v1316, %v1286
    %v1318 = vadd.f32 %v1317, %v1287
    %v1319 = vadd.f32 %v1318, %v1288
    %v1320 = vadd.f32 %v1319, %v1289
    %v1321 = vadd.f32 %v1320, %v1290
    %v1322 = vadd.f32 %v1321, %v1291
    %v1323 = vadd.f32 %v1322, %v1292
    %v1324 = vadd.f32 %v1323, %v1293
    %v1325 = vadd.f32 %v1324, %v1294
    %v1326 = vadd.f32 %v1325, %v1295
    %v1327 = vadd.f32 %v1326, %v1296
    %v1328 = vadd.f32 %v1327, %v1297
    %v1329 = vadd.f32 %v1328, %v1298
    %v1330 = vadd.f32 %v1329, %v1299
    %v1331 = vadd.f32 %v1330, %v1300
    %v1332 = vadd.f32 %v1331, %v1301
    %v1333 = vadd.f32 %v1332, %v1302
    %v1334 = vadd.f32 %v1333, %v1303
    %v1335 = vadd.f32 %v1334, %v1304
    %v1336 = vadd.f32 %v1335, %v1305
    %v1337 = vadd.f32 %v1336, %v1306
    %v1338 = vadd.f32 %v1337, %v1307
    %v1339 = vrot.slane %v1338, 4
    %v1340 = vadd.f32 %v1338, %v1339
    %v1341 = vrot.slane %v1340, 2
    %v1342 = vadd.f32 %v1340, %v1341
    %v1343 = vrot.slane %v1342, 1
    %v1344 = vadd.f32 %v1342, %v1343
    %s1345 = sld [smem:[#allocation2]]
    %v1346 = vstv %s1345
    %v1347 = vadd.f32 %v1344, %v1346
    %1348 = vst [vmem:[#allocation3] sm:$0x1] %v1347
    // Predicated region
    $region22: #{tpu_custom_call.1} parent=1 // pred_check
      _
    $region23: #{tpu_custom_call.1} parent=1 // pred_check_branch
      %1350 = sbr.rel (0) target = $region25
    $region24: #{tpu_custom_call.1} parent=1 // pred_region
      %1352 = vsyncadd [#allocation4], 0
      %s1354 = sshll.u32 [#allocation3], 4
      %s1355 = int_to_ptr.vmem [resolvable:$true] %s1354
      %s1356 = sshll.u32 %s5, 4
      %s1357 = int_to_ptr.hbm [resolvable:$true] %s1356
      %1359 = dma.vmem_to_hbm [thread:$0]  %s1355, 16, %s1357, [#allocation4]
    $region25: #{tpu_custom_call.1} parent=1 // pred_fallthru
      _
    // Predicated region
    $region26: #{tpu_custom_call.1} parent=1 // pred_check
      _
    $region27: #{tpu_custom_call.1} parent=1 // pred_check_branch
      %1361 = sbr.rel (0) target = $region29
    $region28: #{tpu_custom_call.1} parent=1 // pred_region
      %1363 = dma.done [#allocation4], 16
    $region29: #{tpu_custom_call.1} parent=1 // pred_fallthru
      _
    %1364 = vsyncpa [#allocation4], 1

</llo_original>
